<compile_context>
chip_gen: v7x
topology: tpu7x:2x2x1
jax: 0.10.0
libtpu: 0.0.40
codegen_flags: <defaults>
</compile_context>

<pallas_src>
import functools

import jax
import jax.numpy as jnp
from jax.experimental import pallas as pl
from jax.experimental.pallas import tpu as pltpu


_COMPUTE_DTYPE = jnp.bfloat16


def _cdiv(a: int, b: int) -> int:
    return -(-a // b)


def _round_up(a: int, b: int) -> int:
    return _cdiv(a, b) * b


@functools.lru_cache(maxsize=1)
def _vmem_capacity_bytes() -> int:
    """Per-TensorCore VMEM capacity; conservative 64 MiB fallback (v7x)."""
    try:
        info = pltpu.get_tpu_info()
        for name in ("vmem_capacity_bytes", "vmem_size_bytes", "vmem_bytes"):
            cap = getattr(info, name, None)
            if cap:
                return int(cap)
    except Exception:
        pass
    return 64 << 20


def _vmem_need(tm: int, tk: int, dm_pad: int, out_itemsize: int) -> int:
    """Conservative VMEM footprint: double-buffered blocks + f32 accumulator."""
    return (2 * tm * dm_pad * 2            # x blocks (bf16)
            + 2 * dm_pad * tk * 2          # Wu blocks (bf16)
            + 2 * tk * dm_pad * 2          # Wd blocks (bf16)
            + 2 * tm * dm_pad * out_itemsize   # out blocks (real output dtype)
            + tm * dm_pad * 4)             # f32 accumulator scratch


def _select_tiles(M: int, dm_pad: int, inter_pad: int,
                  out_itemsize: int, budget: int):
    """Pick (row_tile, inter_tile), both VMEM-aware and 128/8-aligned."""
    tm_cap = _round_up(M, 8)
    if M > 256:
        # Leave >= 2 row tiles so the "parallel" row axis keeps both
        # TensorCores of a v7x chip busy.
        tm_cap = min(tm_cap, max(128, _round_up(_cdiv(M, 2), 128)))

    # Path 1: weights fully VMEM-resident (tk spans the whole padded inter
    # dim).  Their block index is then constant across the grid, so Pallas
    # DMAs them exactly once and reuses them for every row tile.
    for tm in (512, 384, 256, 128, 64, 32, 16, 8):
        tm_eff = min(tm, tm_cap)
        if _vmem_need(tm_eff, inter_pad, dm_pad, out_itemsize) <= budget:
            return tm_eff, inter_pad

    # Path 2: stream the intermediate dim in chunks; make the row tile as big
    # as fits so each streamed weight byte is amortized over many rows.
    for tm in (1024, 768, 512, 384, 256, 128, 64, 32, 16, 8):
        tm_eff = min(tm, tm_cap)
        for tk in (1024, 512, 256, 128):
            if tk >= inter_pad:
                continue
            if _vmem_need(tm_eff, tk, dm_pad, out_itemsize) <= budget:
                return tm_eff, tk

    return min(8, tm_cap), 128  # last resort (tiny VMEM)


def ffn_kernel(x_ref, wu_ref, wd_ref, o_ref, acc_ref):
    # x_ref:   (tm, dm_pad)   bf16 input rows
    # wu_ref:  (dm_pad, tk)   bf16 chunk of u_proj weight (pre-transposed: K x N)
    # wd_ref:  (tk, dm_pad)   bf16 chunk of d_proj weight (pre-transposed: K x N)
    # o_ref:   (tm, dm_pad)   output tile (written once, at the last inter chunk)
    # acc_ref: (tm, dm_pad)   f32 VMEM accumulator, resident across the inter axis
    k = pl.program_id(1)

    @pl.when(k == 0)
    def _():
        acc_ref[...] = jnp.zeros_like(acc_ref)

    # h = x @ Wu_chunk : canonical (M,K)x(K,N) on the MXU, f32 accumulation.
    h = jnp.dot(x_ref[...], wu_ref[...], preferred_element_type=jnp.float32)
    # sigmoid(h) = 1 / (1 + exp(-h)): exp and the approx reciprocal both run on
    # the EUP slot, keeping VALU slots free for the accumulator update.
    h = pl.reciprocal(1.0 + jnp.exp(-h), approx=True)

    # acc += h @ Wd_chunk : canonical (M,K)x(K,N), f32 accumulation.
    acc_ref[...] += jnp.dot(h.astype(wd_ref.dtype), wd_ref[...],
                            preferred_element_type=jnp.float32)

    @pl.when(k == pl.num_programs(1) - 1)
    def _():
        o_ref[...] = acc_ref[...].astype(o_ref.dtype)


@functools.partial(jax.jit, static_argnames=("tm", "tk"))
def ffn_forward(x, wu, wd, *, tm=None, tk=None):
    """FFN forward: d_proj(sigmoid(u_proj(x))).

    x : (B, S, dm)
    wu: (inter, dm)  -- PyTorch nn.Linear(dm, inter, bias=False).weight
    wd: (dm, inter)  -- PyTorch nn.Linear(inter, dm, bias=False).weight
    """
    B, S, dm = x.shape
    inter, dm_w = wu.shape
    assert dm_w == dm and wd.shape == (dm, inter)

    M = B * S
    out_dtype = x.dtype
    out_itemsize = x.dtype.itemsize
    dm_pad = _round_up(dm, 128)
    inter_128 = _round_up(inter, 128)

    vmem_cap = _vmem_capacity_bytes()
    budget = int(0.70 * vmem_cap)           # headroom for Mosaic internals
    tm_sel, tk_sel = _select_tiles(M, dm_pad, inter_128, out_itemsize, budget)
    tm_eff = tm if tm is not None else tm_sel
    tk_eff = tk if tk is not None else tk_sel

    m_pad = _round_up(M, tm_eff)
    k_pad = _round_up(inter, tk_eff)

    cdt = _COMPUTE_DTYPE

    def _prep(a, rows, cols):
        # Cast / pad only when actually needed; no-op for pre-cast, aligned params.
        if a.dtype != cdt:
            a = a.astype(cdt)
        r, c = a.shape
        if r != rows or c != cols:
            a = jnp.pad(a, ((0, rows - r), (0, cols - c)))
        return a

    # NOTE on padding correctness: zero-padding the intermediate axis is inert
    # ONLY because there is no bias -- padded Wu columns produce sigmoid(0)=0.5
    # in h, but the matching padded Wd rows are zero, so they contribute nothing.
    # Revisit this if a bias or a different activation is ever added.
    x2d = _prep(x.reshape(M, dm), m_pad, dm_pad)
    wu_t = _prep(wu.T, dm_pad, k_pad)    # (dm, inter): K x N for matmul 1
    wd_t = _prep(wd.T, k_pad, dm_pad)    # (inter, dm): K x N for matmul 2

    need = _vmem_need(tm_eff, tk_eff, dm_pad, out_itemsize)
    vmem_limit = int(min(max(need + (4 << 20), 32 << 20), int(0.9 * vmem_cap)))

    cost = pl.CostEstimate(
        flops=4 * M * dm * inter,            # two matmuls, 2*M*dm*inter each
        transcendentals=M * inter,           # one exp per intermediate element
        bytes_accessed=(m_pad * dm_pad * 2   # x read (bf16)
                        + dm_pad * k_pad * 2     # Wu read
                        + k_pad * dm_pad * 2     # Wd read
                        + m_pad * dm_pad * out_itemsize))  # out write

    out2d = pl.pallas_call(
        ffn_kernel,
        out_shape=jax.ShapeDtypeStruct((m_pad, dm_pad), out_dtype),
        grid_spec=pltpu.PrefetchScalarGridSpec(
            num_scalar_prefetch=0,
            grid=(m_pad // tm_eff, k_pad // tk_eff),
            in_specs=[
                pl.BlockSpec((tm_eff, dm_pad), lambda i, k: (i, 0)),
                pl.BlockSpec((dm_pad, tk_eff), lambda i, k: (0, k)),
                pl.BlockSpec((tk_eff, dm_pad), lambda i, k: (k, 0)),
            ],
            out_specs=pl.BlockSpec((tm_eff, dm_pad), lambda i, k: (i, 0)),
            scratch_shapes=[pltpu.VMEM((tm_eff, dm_pad), jnp.float32)],
        ),
        compiler_params=pltpu.CompilerParams(
            dimension_semantics=("parallel", "arbitrary"),
            vmem_limit_bytes=vmem_limit),
        cost_estimate=cost,
    )(x2d, wu_t, wd_t)

    out = out2d
    if m_pad != M or dm_pad != dm:
        out = out[:M, :dm]
    return out.reshape(B, S, dm)


if __name__ == "__main__":
    # Small Config: dm=32, intermediate_size=64, seq=8, batch=2.
    B, S, dm, inter = 2, 8, 32, 64

    key = jax.random.PRNGKey(0)
    kx, ku, kd = jax.random.split(key, 3)

    x = jax.random.normal(kx, (B, S, dm), dtype=jnp.float32)
    # nn.Linear(bias=False) weight shapes: u_proj (inter, dm), d_proj (dm, inter).
    bound_u = 1.0 / (dm ** 0.5)
    bound_d = 1.0 / (inter ** 0.5)
    wu = jax.random.uniform(ku, (inter, dm), jnp.float32, -bound_u, bound_u)
    wd = jax.random.uniform(kd, (dm, inter), jnp.float32, -bound_d, bound_d)

    # Parameters are stored in the MXU compute dtype once ("at load time") so
    # the forward pass never pays a per-call weight cast round-trip in HBM.
    wu_p = wu.astype(jnp.bfloat16)
    wd_p = wd.astype(jnp.bfloat16)

    out = ffn_forward(x, wu_p, wd_p)
    out = jax.block_until_ready(out)

    # Pure-JAX f32 reference on the same bf16-rounded operands
    # (same semantics as the PyTorch forward: d_proj(sigmoid(u_proj(x)))).
    xr = x.astype(jnp.bfloat16).astype(jnp.float32)
    wur = wu_p.astype(jnp.float32)
    wdr = wd_p.astype(jnp.float32)
    ref = jnp.einsum("bsi,di->bsd",
                     jax.nn.sigmoid(jnp.einsum("bsd,id->bsi", xr, wur)), wdr)

    assert out.shape == (B, S, dm) and out.dtype == x.dtype
    err = float(jnp.max(jnp.abs(out - ref)))
    assert jnp.allclose(out, ref, atol=2e-2, rtol=2e-2), err

    print("KERNEL_OK")
</pallas_src>

<mosaic_0001>
module attributes {stable_mosaic.version = 11 : i64} {
  func.func @ffn_kernel(%arg0: i32, %arg1: i32, %arg2: memref<16x128xbf16, #tpu.memory_space<vmem>>, %arg3: memref<128x128xbf16, #tpu.memory_space<vmem>>, %arg4: memref<128x128xbf16, #tpu.memory_space<vmem>>, %arg5: memref<16x128xf32, #tpu.memory_space<vmem>>, %arg6: memref<16x128xf32, #tpu.memory_space<vmem>>) attributes {dimension_semantics = [#tpu.dimension_semantics<parallel>, #tpu.dimension_semantics<arbitrary>], iteration_bounds = array<i64: 1, 1>, scalar_prefetch = 0 : i64, scratch_operands = 1 : i64, tpu.core_type = #tpu.core_type<tc>, window_params = [{transform_indices = @transform_0, window_bounds = array<i64: 16, 128>}, {transform_indices = @transform_1, window_bounds = array<i64: 128, 128>}, {transform_indices = @transform_2, window_bounds = array<i64: 128, 128>}, {transform_indices = @transform_3, window_bounds = array<i64: 16, 128>}]} {
    %c0_i32 = arith.constant 0 : i32
    %0 = arith.cmpi eq, %arg1, %c0_i32 : i32
    %1 = arith.extui %0 : i1 to i32
    %c0_i32_0 = arith.constant 0 : i32
    %2 = arith.cmpi ne, %1, %c0_i32_0 : i32
    scf.if %2 {
      %cst_15 = arith.constant 0.000000e+00 : f32
      %21 = vector.broadcast %cst_15 : f32 to vector<16x128xf32>
      %c0_16 = arith.constant 0 : index
      %c0_17 = arith.constant 0 : index
      %22 = vector.load %arg6[%c0_16, %c0_17] : memref<16x128xf32, #tpu.memory_space<vmem>>, vector<16x128xf32>
      tpu.vector_store %arg6[%c0_16, %c0_17], %21 {strides = array<i32>} : memref<16x128xf32, #tpu.memory_space<vmem>>, vector<16x128xf32>,
    } else {
    }
    %c0 = arith.constant 0 : index
    %c0_1 = arith.constant 0 : index
    %3 = vector.load %arg2[%c0, %c0_1] : memref<16x128xbf16, #tpu.memory_space<vmem>>, vector<16x128xbf16>
    %c0_2 = arith.constant 0 : index
    %c0_3 = arith.constant 0 : index
    %4 = vector.load %arg3[%c0_2, %c0_3] : memref<128x128xbf16, #tpu.memory_space<vmem>>, vector<128x128xbf16>
    %cst = arith.constant dense<0.000000e+00> : vector<16x128xf32>
    %5 = tpu.matmul %3, %4, %cst {dimension_numbers = #tpu.dot_dimension_numbers<[1], [0], [0], [1], [0, 0, 1, 1], [], []>} : vector<16x128xbf16>, vector<128x128xbf16>, vector<16x128xf32> -> vector<16x128xf32>
    %cst_4 = arith.constant 0.000000e+00 : f32
    %6 = vector.broadcast %cst_4 : f32 to vector<16x128xf32>
    %7 = arith.subf %6, %5 : vector<16x128xf32>
    %8 = math.exp %7 : vector<16x128xf32>
    %cst_5 = arith.constant 1.000000e+00 : f32
    %9 = vector.broadcast %cst_5 : f32 to vector<16x128xf32>
    %10 = arith.addf %9, %8 : vector<16x128xf32>
    %11 = tpu.reciprocal %10 {approx = true} : vector<16x128xf32> -> vector<16x128xf32>
    %c0_6 = arith.constant 0 : index
    %c0_7 = arith.constant 0 : index
    %12 = vector.load %arg6[%c0_6, %c0_7] : memref<16x128xf32, #tpu.memory_space<vmem>>, vector<16x128xf32>
    %13 = arith.truncf %11 : vector<16x128xf32> to vector<16x128xbf16>
    %c0_8 = arith.constant 0 : index
    %c0_9 = arith.constant 0 : index
    %14 = vector.load %arg4[%c0_8, %c0_9] : memref<128x128xbf16, #tpu.memory_space<vmem>>, vector<128x128xbf16>
    %cst_10 = arith.constant dense<0.000000e+00> : vector<16x128xf32>
    %15 = tpu.matmul %13, %14, %cst_10 {dimension_numbers = #tpu.dot_dimension_numbers<[1], [0], [0], [1], [0, 0, 1, 1], [], []>} : vector<16x128xbf16>, vector<128x128xbf16>, vector<16x128xf32> -> vector<16x128xf32>
    %16 = arith.addf %12, %15 : vector<16x128xf32>
    %c0_11 = arith.constant 0 : index
    %c0_12 = arith.constant 0 : index
    %17 = vector.load %arg6[%c0_11, %c0_12] : memref<16x128xf32, #tpu.memory_space<vmem>>, vector<16x128xf32>
    tpu.vector_store %arg6[%c0_11, %c0_12], %16 {strides = array<i32>} : memref<16x128xf32, #tpu.memory_space<vmem>>, vector<16x128xf32>,
    %c0_i32_13 = arith.constant 0 : i32
    %18 = arith.cmpi eq, %arg1, %c0_i32_13 : i32
    %19 = arith.extui %18 : i1 to i32
    %c0_i32_14 = arith.constant 0 : i32
    %20 = arith.cmpi ne, %19, %c0_i32_14 : i32
    scf.if %20 {
      %c0_15 = arith.constant 0 : index
      %c0_16 = arith.constant 0 : index
      %21 = vector.load %arg6[%c0_15, %c0_16] : memref<16x128xf32, #tpu.memory_space<vmem>>, vector<16x128xf32>
      %c0_17 = arith.constant 0 : index
      %c0_18 = arith.constant 0 : index
      %22 = vector.load %arg5[%c0_17, %c0_18] : memref<16x128xf32, #tpu.memory_space<vmem>>, vector<16x128xf32>
      tpu.vector_store %arg5[%c0_17, %c0_18], %21 {strides = array<i32>} : memref<16x128xf32, #tpu.memory_space<vmem>>, vector<16x128xf32>,
    } else {
    }
    return
  }
  func.func @transform_0(%arg0: i32, %arg1: i32) -> (i32, i32) {
    %c0_i32 = arith.constant 0 : i32
    %c0_i32_0 = arith.constant 0 : i32
    return %arg0, %c0_i32 : i32, i32
  }
  func.func @transform_1(%arg0: i32, %arg1: i32) -> (i32, i32) {
    %c0_i32 = arith.constant 0 : i32
    %c0_i32_0 = arith.constant 0 : i32
    return %c0_i32, %arg1 : i32, i32
  }
  func.func @transform_2(%arg0: i32, %arg1: i32) -> (i32, i32) {
    %c0_i32 = arith.constant 0 : i32
    %c0_i32_0 = arith.constant 0 : i32
    return %arg1, %c0_i32 : i32, i32
  }
  func.func @transform_3(%arg0: i32, %arg1: i32) -> (i32, i32) {
    %c0_i32 = arith.constant 0 : i32
    %c0_i32_0 = arith.constant 0 : i32
    return %arg0, %c0_i32 : i32, i32
  }
}

</mosaic_0001>

<llo_original>
// kernel: ffn_forward.1
$region0: #{ffn_forward.1}
  #allocation0 [shape = 'u32[]', space=smem, size = 0x4, offset = 0x4, fixed_abs, tag = 'smem constant byte address 0x4 - core index']
  #allocation1 [shape = 'u32[144,128]{1,0:T(1,128)}', space=vmem, size = 0x12000, scoped, tag = 'internal scratch']
  #allocation2 [shape = 'f32[16,128]{1,0:T(8,128)}', space=vmem, size = 0x2000, scoped, tag = 'scratch operand']
  %s0 = inlined_call_operand.vmem [shape: bf16[16,128], index: 0, kind: input, shape index: {}]
  %s1 = inlined_call_operand.vmem [shape: bf16[128,128], index: 1, kind: input, shape index: {}]
  %s2 = inlined_call_operand.vmem [shape: bf16[128,128], index: 2, kind: input, shape index: {}]
  %s3 = inlined_call_operand.vmem [shape: f32[16,128], index: 3, kind: output, shape index: {}]
  %s4 = sld [smem:[#allocation0]]
  $region30: #{ffn_forward.1} parent=0
    _
  %s6 = ssub.s32 1, %s4
  %s7 = scalar_select 0, %s6, %s4
  // Predicated region
  $region2: #{ffn_forward.1} parent=0 // pred_check
    _
  $region3: #{ffn_forward.1} parent=0 // pred_check_branch
    %9 = sbr.rel (0) target = $region5
  $region4: #{ffn_forward.1} parent=0 // pred_region
    _
  $region5: #{ffn_forward.1} parent=0 // pred_fallthru
    _
  // Predicated region
  $region6: #{ffn_forward.1} parent=0 // pred_check
    _
  $region7: #{ffn_forward.1} parent=0 // pred_check_branch
    %11 = sbr.rel (0) target = $region9
  $region8: #{ffn_forward.1} parent=0 // pred_region
    _
  $region9: #{ffn_forward.1} parent=0 // pred_fallthru
    _
  // Predicated region
  $region10: #{ffn_forward.1} parent=0 // pred_check
    _
  $region11: #{ffn_forward.1} parent=0 // pred_check_branch
    %13 = sbr.rel (0) target = $region13
  $region12: #{ffn_forward.1} parent=0 // pred_region
    _
  $region13: #{ffn_forward.1} parent=0 // pred_fallthru
    _
  %p15 = scmp.eq.s32.totalorder 0, 0
  // Predicated region
  $region14: #{ffn_forward.1} parent=0 // pred_check
    %p16 = pneg %p15
  $region15: #{ffn_forward.1} parent=0 // pred_check_branch
    %18 = sbr.rel (%p16) target = $region17
  $region16: #{ffn_forward.1} parent=0 // pred_region
    %19 = vst [vmem:[#allocation2] sm:$0xff] 0.0
    %20 = vst [vmem:[#allocation2 + $0x8] sm:$0xff] 0.0
  $region17: #{ffn_forward.1} parent=0 // pred_fallthru
    _
  %v21 = vld [vmem:[%s0] sm:$0xf]
  %v22 = vld [vmem:[%s0 + $0x4] sm:$0xf]
  %v23 = vld [vmem:[%s1] sm:$0xf]
  %v24 = vld [vmem:[%s1 + $0x4] sm:$0xf]
  %v25 = vld [vmem:[%s1 + $0x8] sm:$0xf]
  %v26 = vld [vmem:[%s1 + $0xc] sm:$0xf]
  %v27 = vld [vmem:[%s1 + $0x10] sm:$0xf]
  %v28 = vld [vmem:[%s1 + $0x14] sm:$0xf]
  %v29 = vld [vmem:[%s1 + $0x18] sm:$0xf]
  %v30 = vld [vmem:[%s1 + $0x1c] sm:$0xf]
  %v31 = vld [vmem:[%s1 + $0x20] sm:$0xf]
  %v32 = vld [vmem:[%s1 + $0x24] sm:$0xf]
  %v33 = vld [vmem:[%s1 + $0x28] sm:$0xf]
  %v34 = vld [vmem:[%s1 + $0x2c] sm:$0xf]
  %v35 = vld [vmem:[%s1 + $0x30] sm:$0xf]
  %v36 = vld [vmem:[%s1 + $0x34] sm:$0xf]
  %v37 = vld [vmem:[%s1 + $0x38] sm:$0xf]
  %v38 = vld [vmem:[%s1 + $0x3c] sm:$0xf]
  %v41 = vunpack.c.l.b16 %v21
  %v42 = vunpack.c.l.b16 %v22
  %v43 = vpack.c.b16 %v42, %v41
  %v61 = vunpack.c.l.b16 %v23
  %v62 = vunpack.c.l.b16 %v24
  %v63 = vunpack.c.l.b16 %v25
  %v64 = vunpack.c.l.b16 %v26
  %v65 = vunpack.c.l.b16 %v27
  %v66 = vunpack.c.l.b16 %v28
  %v67 = vunpack.c.l.b16 %v29
  %v68 = vunpack.c.l.b16 %v30
  %v69 = vunpack.c.l.b16 %v31
  %v70 = vunpack.c.l.b16 %v32
  %v71 = vunpack.c.l.b16 %v33
  %v72 = vunpack.c.l.b16 %v34
  %v73 = vunpack.c.l.b16 %v35
  %v74 = vunpack.c.l.b16 %v36
  %v75 = vunpack.c.l.b16 %v37
  %v76 = vunpack.c.l.b16 %v38
  %v77 = vpack.c.b16 %v62, %v61
  %v78 = vpack.c.b16 %v64, %v63
  %v79 = vpack.c.b16 %v66, %v65
  %v80 = vpack.c.b16 %v68, %v67
  %v81 = vpack.c.b16 %v70, %v69
  %v82 = vpack.c.b16 %v72, %v71
  %v83 = vpack.c.b16 %v74, %v73
  %v84 = vpack.c.b16 %v76, %v75
  %93 = vmatprep.subr.bf16.mxu0 0
  %94 = vmatpush1.bf16.msra.mxu0 %v77
  %95 = vmatprep.subr.bf16.mxu0 0
  %96 = vmatpush1.bf16.msra.mxu0 %v78
  %97 = vmatprep.subr.bf16.mxu0 0
  %98 = vmatpush1.bf16.msra.mxu0 %v79
  %99 = vmatprep.subr.bf16.mxu0 0
  %100 = vmatpush1.bf16.msra.mxu0 %v80
  %101 = vmatprep.subr.bf16.mxu0 0
  %102 = vmatpush1.bf16.msra.mxu0 %v81
  %103 = vmatprep.subr.bf16.mxu0 0
  %104 = vmatpush1.bf16.msra.mxu0 %v82
  %105 = vmatprep.subr.bf16.mxu0 0
  %106 = vmatpush1.bf16.msra.mxu0 %v83
  %107 = vmatprep.subr.bf16.mxu0 0
  %108 = vmatpush1.bf16.msra.mxu0 %v84
  %109 = vmatprep.subr.bf16.mxu0 0
  %110 = vmatpush1.bf16.msra.mxu0 0
  %111 = vmatprep.subr.bf16.mxu0 0
  %112 = vmatpush1.bf16.msra.mxu0 0
  %113 = vmatprep.subr.bf16.mxu0 0
  %114 = vmatpush1.bf16.msra.mxu0 0
  %115 = vmatprep.subr.bf16.mxu0 0
  %116 = vmatpush1.bf16.msra.mxu0 0
  %117 = vmatprep.subr.bf16.mxu0 0
  %118 = vmatpush1.bf16.msra.mxu0 0
  %119 = vmatprep.subr.bf16.mxu0 0
  %120 = vmatpush1.bf16.msra.mxu0 0
  %121 = vmatprep.subr.bf16.mxu0 0
  %122 = vmatpush1.bf16.msra.mxu0 0
  %123 = vmatprep.subr.bf16.mxu0 0
  %124 = vmatpush1.bf16.msra.mxu0 0
  %125 = vmatprep.mubr.bf16.mxu0 0
  %126 = vmatmul.mubr.bf16.gmra.mrb[0].mxu0 %v43
  %v127 = vpop.f32.mrb[0].mxu0
  %v128 = vadd.f32 0.0, %v127
  %v129 = vpop.f32.mrb[0].mxu0
  %v130 = vpop.f32.mrb[0].mxu0
  %v131 = vadd.f32 0.0, %v130
  %v132 = vpop.f32.mrb[0].mxu0
  %133 = vdwg.mxu0
  %v134 = vsub.f32 0.0, %v128
  %v135 = vsub.f32 0.0, %v131
  %v136 = vmul.f32 %v134, 1.442695
  %v137 = vpow.pop %v136
  %v138 = vmul.f32 %v135, 1.442695
  %v139 = vpow.pop %v138
  %v140 = vadd.f32 %v137, 1.0
  %v141 = vadd.f32 %v139, 1.0
  %v142 = vrcp.pop %v140
  %v143 = vrcp.pop %v141
  %v144 = vld [vmem:[#allocation2] sm:$0xff]
  %v145 = vld [vmem:[#allocation2 + $0x8] sm:$0xff]
  %v146 = vpack.c.bf16 %v143, %v142
  %v147 = vld [vmem:[%s2] sm:$0xf]
  %v148 = vld [vmem:[%s2 + $0x4] sm:$0xf]
  %v149 = vld [vmem:[%s2 + $0x8] sm:$0xf]
  %v150 = vld [vmem:[%s2 + $0xc] sm:$0xf]
  %v151 = vld [vmem:[%s2 + $0x10] sm:$0xf]
  %v152 = vld [vmem:[%s2 + $0x14] sm:$0xf]
  %v153 = vld [vmem:[%s2 + $0x18] sm:$0xf]
  %v154 = vld [vmem:[%s2 + $0x1c] sm:$0xf]
  %v155 = vld [vmem:[%s2 + $0x20] sm:$0xf]
  %v156 = vld [vmem:[%s2 + $0x24] sm:$0xf]
  %v157 = vld [vmem:[%s2 + $0x28] sm:$0xf]
  %v158 = vld [vmem:[%s2 + $0x2c] sm:$0xf]
  %v159 = vld [vmem:[%s2 + $0x30] sm:$0xf]
  %v160 = vld [vmem:[%s2 + $0x34] sm:$0xf]
  %v161 = vld [vmem:[%s2 + $0x38] sm:$0xf]
  %v162 = vld [vmem:[%s2 + $0x3c] sm:$0xf]
  %v179 = vunpack.c.l.b16 %v147
  %v180 = vunpack.c.l.b16 %v148
  %v181 = vunpack.c.l.b16 %v149
  %v182 = vunpack.c.l.b16 %v150
  %v183 = vunpack.c.l.b16 %v151
  %v184 = vunpack.c.l.b16 %v152
  %v185 = vunpack.c.l.b16 %v153
  %v186 = vunpack.c.l.b16 %v154
  %v187 = vunpack.c.l.b16 %v155
  %v188 = vunpack.c.l.b16 %v156
  %v189 = vunpack.c.l.b16 %v157
  %v190 = vunpack.c.l.b16 %v158
  %v191 = vunpack.c.l.b16 %v159
  %v192 = vunpack.c.l.b16 %v160
  %v193 = vunpack.c.l.b16 %v161
  %v194 = vunpack.c.l.b16 %v162
  %v195 = vpack.c.b16 %v180, %v179
  %v196 = vpack.c.b16 %v182, %v181
  %v197 = vpack.c.b16 %v184, %v183
  %v198 = vpack.c.b16 %v186, %v185
  %v199 = vpack.c.b16 %v188, %v187
  %v200 = vpack.c.b16 %v190, %v189
  %v201 = vpack.c.b16 %v192, %v191
  %v202 = vpack.c.b16 %v194, %v193
  %211 = vmatprep.subr.bf16.mxu0 0
  %212 = vmatpush1.bf16.msra.mxu0 %v195
  %213 = vmatprep.subr.bf16.mxu0 0
  %214 = vmatpush1.bf16.msra.mxu0 %v196
  %215 = vmatprep.subr.bf16.mxu0 0
  %216 = vmatpush1.bf16.msra.mxu0 %v197
  %217 = vmatprep.subr.bf16.mxu0 0
  %218 = vmatpush1.bf16.msra.mxu0 %v198
  %219 = vmatprep.subr.bf16.mxu0 0
  %220 = vmatpush1.bf16.msra.mxu0 %v199
  %221 = vmatprep.subr.bf16.mxu0 0
  %222 = vmatpush1.bf16.msra.mxu0 %v200
  %223 = vmatprep.subr.bf16.mxu0 0
  %224 = vmatpush1.bf16.msra.mxu0 %v201
  %225 = vmatprep.subr.bf16.mxu0 0
  %226 = vmatpush1.bf16.msra.mxu0 %v202
  %227 = vmatprep.subr.bf16.mxu0 0
  %228 = vmatpush1.bf16.msra.mxu0 0
  %229 = vmatprep.subr.bf16.mxu0 0
  %230 = vmatpush1.bf16.msra.mxu0 0
  %231 = vmatprep.subr.bf16.mxu0 0
  %232 = vmatpush1.bf16.msra.mxu0 0
  %233 = vmatprep.subr.bf16.mxu0 0
  %234 = vmatpush1.bf16.msra.mxu0 0
  %235 = vmatprep.subr.bf16.mxu0 0
  %236 = vmatpush1.bf16.msra.mxu0 0
  %237 = vmatprep.subr.bf16.mxu0 0
  %238 = vmatpush1.bf16.msra.mxu0 0
  %239 = vmatprep.subr.bf16.mxu0 0
  %240 = vmatpush1.bf16.msra.mxu0 0
  %241 = vmatprep.subr.bf16.mxu0 0
  %242 = vmatpush1.bf16.msra.mxu0 0
  %243 = vmatprep.mubr.bf16.mxu0 0
  %244 = vmatmul.mubr.bf16.gmra.mrb[0].mxu0 %v146
  %v245 = vpop.f32.mrb[0].mxu0
  %v246 = vadd.f32 0.0, %v245
  %v247 = vpop.f32.mrb[0].mxu0
  %v248 = vpop.f32.mrb[0].mxu0
  %v249 = vadd.f32 0.0, %v248
  %v250 = vpop.f32.mrb[0].mxu0
  %251 = vdwg.mxu0
  %v252 = vadd.f32 %v144, %v246
  %v253 = vadd.f32 %v145, %v249
  %254 = vst [vmem:[#allocation2] sm:$0xff] %v252
  %255 = vst [vmem:[#allocation2 + $0x8] sm:$0xff] %v253
  // Predicated region
  $region18: #{ffn_forward.1} parent=0 // pred_check
    %p256 = pneg %p15
  $region19: #{ffn_forward.1} parent=0 // pred_check_branch
    %258 = sbr.rel (%p256) target = $region21
  $region20: #{ffn_forward.1} parent=0 // pred_region
    %v259 = vld [vmem:[#allocation2] sm:$0xff]
    %v260 = vld [vmem:[#allocation2 + $0x8] sm:$0xff]
    %261 = vst [vmem:[%s3] sm:$0xff] %v259
    %262 = vst [vmem:[%s3 + $0x8] sm:$0xff] %v260
  $region21: #{ffn_forward.1} parent=0 // pred_fallthru
    _
  // Predicated region
  $region22: #{ffn_forward.1} parent=0 // pred_check
    _
  $region23: #{ffn_forward.1} parent=0 // pred_check_branch
    %264 = sbr.rel (0) target = $region25
  $region24: #{ffn_forward.1} parent=0 // pred_region
    _
  $region25: #{ffn_forward.1} parent=0 // pred_fallthru
    _
  // Predicated region
  $region26: #{ffn_forward.1} parent=0 // pred_check
    _
  $region27: #{ffn_forward.1} parent=0 // pred_check_branch
    %266 = sbr.rel (0) target = $region29
  $region28: #{ffn_forward.1} parent=0 // pred_region
    _
  $region29: #{ffn_forward.1} parent=0 // pred_fallthru
    _

</llo_original>
